<compile_context>
chip_gen: v7x
topology: tpu7x:2x2x1
jax: 0.10.0
libtpu: 0.0.40
codegen_flags: <defaults>
</compile_context>

<pallas_src>
import jax
import jax.numpy as jnp
from jax import lax
from jax.experimental import pallas as pl
from jax.experimental.pallas import tpu as pltpu

# ---- hyper-parameters (small shapes, consistent with the module, scaled down) ----
DIM = 3                 # dim
C_DIM = 32              # c_dim            (module default 128)
HIDDEN = 32             # transformation_decoder_hidden_size (module default 128)
N_PRIM = 6              # n_primitives
N_BASIS = 9             # angular radius basis terms (SH-like)
TRANSITION_RANGE = 3.0  # transition_range
LAST_SCALE = 0.1        # last_scale
SHARPNESS = 10.0        # slope of the surface-mask sigmoid
TILE_N = 2048           # query-axis tile (lane-dense; <0.5 MiB double-buffered on any chip)
LANE = 128


def _round_up(x, m):
    return ((x + m - 1) // m) * m


def _sigmoid_eup(x):
    # EUP-friendly sigmoid: tanh lands on the (otherwise idle) EUP slot instead of a
    # multi-op VALU Newton divide, and VALU is the saturating unit in this kernel.
    return 0.5 * jnp.tanh(0.5 * x) + 0.5


def nsd_coord_kernel(trans_ref, coeff_ref, coord_ref, mask_ref, rad_c_ref):
    """Streaming kernel over a tile of query points: radius in coord direction + surface mask.

    trans_ref: (DIM, B, P, 1)     -- resident; P in the sublane dim, unit lane dim
    coeff_ref: (N_BASIS, B, P, 1) -- resident
    coord_ref: (DIM, B, TILE)     -- streamed, lane-dense
    mask_ref / rad_c_ref: (B, P, TILE) lane-dense outputs
    """
    lx = coord_ref[0][:, None, :] - trans_ref[0]                      # (B,1,T)-(B,P,1)->(B,P,T)
    ly = coord_ref[1][:, None, :] - trans_ref[1]
    lz = coord_ref[2][:, None, :] - trans_ref[2]

    sq = lx * lx + ly * ly + lz * lz
    inv_norm = lax.rsqrt(sq + 1e-12)                                  # one rsqrt, no sqrt/div
    norm = sq * inv_norm
    ux = lx * inv_norm
    uy = ly * inv_norm
    uz = lz * inv_norm

    r2 = ux * ux + uy * uy
    inv_st = lax.rsqrt(jnp.maximum(r2, 1e-12))                        # one rsqrt, no sqrt/div
    s_t = r2 * inv_st
    c_p = ux * inv_st
    s_p = uy * inv_st
    # c_t == uz ; s_t*c_p == ux ; s_t*s_p == uy ; c_t*c_p == uz*c_p ; c_t*s_p == uz*s_p

    co = coeff_ref[...]                                               # (K, B, P, 1) resident

    def c(k):
        return co[k]                                                  # (B, P, 1) lane broadcast

    # interleaved basis / accumulation keeps vreg pressure low
    logit = c(0) + c(1) * s_t
    logit = logit + c(2) * uz
    logit = logit + c(3) * s_p
    logit = logit + c(4) * c_p
    logit = logit + c(5) * ux
    logit = logit + c(6) * uy
    logit = logit + c(7) * (uz * c_p)
    logit = logit + c(8) * (uz * s_p)

    rad = LAST_SCALE * _sigmoid_eup(logit)                            # (B, P, TILE)
    # two back-to-back lane-dense stores straight from registers
    rad_c_ref[...] = rad
    mask_ref[...] = _sigmoid_eup((rad - norm) * SHARPNESS)


def nsd_preamble(params, color_feature, angles):
    """Tiny MLP heads + angle-path outputs in plain XLA (MXU utilization in a Pallas launch
    would be ~0% and the launch + param DMA would exceed the compute it replaces)."""
    B = color_feature.shape[0]
    P = angles.shape[1]
    feat = color_feature.astype(jnp.float32)

    # ---- TransformationDecoder (ParamNet MLP) ----
    h = jax.nn.relu(feat @ params["w1"] + params["b1"])
    h = jax.nn.relu(h @ params["w2"] + params["b2"])
    # fused translation head: columns grouped as [x-prims | y-prims | z-prims]
    tall = jnp.tanh(h @ params["w3"] + params["b3"]) * TRANSITION_RANGE     # (B, DIM*P)
    # fused coefficient head: columns grouped as [basis0-prims | ... | basis8-prims]
    call = feat @ params["wg"] + params["bg"]                               # (B, K*P)

    trans_bdp = tall.reshape(B, DIM, P)                                     # (B, DIM, P)
    coeff_bkp = call.reshape(B, N_BASIS, P)                                 # (B, K, P)

    # ---- radius + surface points at the sampled angles (tiny, once) ----
    theta = angles[..., 0].astype(jnp.float32)                              # (B, P, NA)
    phi = angles[..., 1].astype(jnp.float32)
    st, ct = jnp.sin(theta), jnp.cos(theta)
    sp, cp = jnp.sin(phi), jnp.cos(phi)

    def ck(k):
        return coeff_bkp[:, k, :][:, :, None]                               # (B, P, 1)

    stcp = st * cp
    stsp = st * sp
    logit = (ck(0) + ck(1) * st + ck(2) * ct + ck(3) * sp + ck(4) * cp
             + ck(5) * stcp + ck(6) * stsp + ck(7) * (ct * cp) + ck(8) * (ct * sp))
    rad_a = LAST_SCALE * jax.nn.sigmoid(logit)                              # (B, P, NA)  (o3)

    unit = jnp.stack([stcp, stsp, ct], axis=-1)                             # (B, P, NA, DIM)
    trans_bpd = jnp.transpose(trans_bdp, (0, 2, 1))                         # (B, P, DIM)
    pcoord = trans_bpd[:, :, None, :] + rad_a[..., None] * unit             # (B, P, NA, DIM)

    # layout for the streaming kernel: P in the sublane dim, unit lane dim (no relayouts later)
    trans_cf = jnp.transpose(trans_bdp, (1, 0, 2))[..., None]               # (DIM, B, P, 1)
    coeff_cf = jnp.transpose(coeff_bkp, (1, 0, 2))[..., None]               # (K, B, P, 1)
    return trans_cf, coeff_cf, pcoord, rad_a


def neural_star_domain_forward(params, coord, color_feature, angles):
    """coord: (B, N, DIM), color_feature: (B, C_DIM), angles: (B, N_PRIM, NA, DIM-1).
    Returns (pcoord, surface_mask, radius_at_coord, radius_at_angles, None)."""
    B, N, _ = coord.shape
    _, P, NA, _ = angles.shape

    # ---- stage 1: run-once preamble in plain XLA ----
    trans_cf, coeff_cf, pcoord, rad_a = nsd_preamble(params, color_feature, angles)

    # ---- stage 2: streaming Pallas kernel gridded over the query-point axis N ----
    coord_t = jnp.transpose(coord, (2, 0, 1)).astype(jnp.float32)           # (DIM, B, N)

    # Lane-dense tile selection: always a multiple of 128 (unmasked vst), and when N > 128
    # guarantee >=2 grid steps so v7x's "parallel" axis actually shards across both TCs.
    n128 = _round_up(N, LANE)
    if n128 > LANE:
        half = _round_up(max(n128 // 2, LANE), LANE)
        tile_n = min(TILE_N, half)
    else:
        tile_n = LANE
    n_pad = _round_up(N, tile_n)
    if n_pad != N:
        coord_t = jnp.pad(coord_t, ((0, 0), (0, 0), (0, n_pad - N)))

    mask, rad_c = pl.pallas_call(
        nsd_coord_kernel,
        out_shape=(jax.ShapeDtypeStruct((B, P, n_pad), jnp.float32),        # o1: surface mask
                   jax.ShapeDtypeStruct((B, P, n_pad), jnp.float32)),       # o2: radius @ coord
        grid=(n_pad // tile_n,),
        in_specs=[
            pl.BlockSpec((DIM, B, P, 1), lambda i: (0, 0, 0, 0)),       # resident across grid
            pl.BlockSpec((N_BASIS, B, P, 1), lambda i: (0, 0, 0, 0)),   # resident across grid
            pl.BlockSpec((DIM, B, tile_n), lambda i: (0, 0, i)),        # streamed coord tile
        ],
        out_specs=(
            pl.BlockSpec((B, P, tile_n), lambda i: (0, 0, i)),
            pl.BlockSpec((B, P, tile_n), lambda i: (0, 0, i)),
        ),
        compiler_params=pltpu.CompilerParams(
            dimension_semantics=("parallel",),    # shard N across TCs on v7x
        ),
    )(trans_cf, coeff_cf, coord_t)

    if n_pad != N:
        mask = mask[:, :, :N]
        rad_c = rad_c[:, :, :N]

    return pcoord, mask, rad_c, rad_a, None


def init_params(key):
    ks = jax.random.split(key, 4)

    def w(k, shape, scale=0.1):
        return jax.random.normal(k, shape, jnp.float32) * scale

    return dict(
        # ParamNet MLP
        w1=w(ks[0], (C_DIM, HIDDEN)),
        b1=jnp.zeros((1, HIDDEN), jnp.float32),
        w2=w(ks[1], (HIDDEN, HIDDEN)),
        b2=jnp.zeros((1, HIDDEN), jnp.float32),
        # fused translation heads: columns = [x prims | y prims | z prims]
        w3=w(ks[2], (HIDDEN, DIM * N_PRIM)),
        b3=jnp.zeros((1, DIM * N_PRIM), jnp.float32),
        # fused radius-coefficient heads: columns = [basis0 prims | ... | basis8 prims]
        wg=w(ks[3], (C_DIM, N_BASIS * N_PRIM)),
        bg=jnp.zeros((1, N_BASIS * N_PRIM), jnp.float32),
    )


if __name__ == "__main__":
    key = jax.random.PRNGKey(0)
    kp, kc, kf, ka = jax.random.split(key, 4)
    B, N, NA = 2, 16, 8

    params = init_params(kp)
    coord = jax.random.normal(kc, (B, N, DIM), jnp.float32)
    color_feature = jax.random.normal(kf, (B, C_DIM), jnp.float32)
    angles = jax.random.uniform(ka, (B, N_PRIM, NA, DIM - 1), jnp.float32,
                                minval=0.0, maxval=2.0 * jnp.pi)

    pcoord, o1, o2, o3, none_out = neural_star_domain_forward(
        params, coord, color_feature, angles)
    jax.block_until_ready((pcoord, o1, o2, o3))

    assert pcoord.shape == (B, N_PRIM, NA, DIM)
    assert o1.shape == (B, N_PRIM, N)
    assert o2.shape == (B, N_PRIM, N)
    assert o3.shape == (B, N_PRIM, NA)
    assert none_out is None
    print("KERNEL_OK")
</pallas_src>

<mosaic_0001>
module attributes {stable_mosaic.version = 11 : i64} {
  func.func @nsd_coord_kernel(%arg0: i32, %arg1: memref<3x2x6x1xf32, #tpu.memory_space<vmem>>, %arg2: memref<9x2x6x1xf32, #tpu.memory_space<vmem>>, %arg3: memref<3x2x128xf32, #tpu.memory_space<vmem>>, %arg4: memref<2x6x128xf32, #tpu.memory_space<vmem>>, %arg5: memref<2x6x128xf32, #tpu.memory_space<vmem>>) attributes {dimension_semantics = [#tpu.dimension_semantics<parallel>], iteration_bounds = array<i64: 1>, scalar_prefetch = 0 : i64, scratch_operands = 0 : i64, tpu.core_type = #tpu.core_type<tc>, window_params = [{pipeline_mode = #tpu.pipeline_mode<synchronous>, transform_indices = @transform_0, window_bounds = array<i64: 3, 2, 6, 1>}, {pipeline_mode = #tpu.pipeline_mode<synchronous>, transform_indices = @transform_1, window_bounds = array<i64: 9, 2, 6, 1>}, {transform_indices = @transform_2, window_bounds = array<i64: 3, 2, 128>}, {transform_indices = @transform_3, window_bounds = array<i64: 2, 6, 128>}, {transform_indices = @transform_4, window_bounds = array<i64: 2, 6, 128>}]} {
    %c0 = arith.constant 0 : index
    %c0_0 = arith.constant 0 : index
    %c0_1 = arith.constant 0 : index
    %0 = vector.load %arg3[%c0, %c0_0, %c0_1] : memref<3x2x128xf32, #tpu.memory_space<vmem>>, vector<1x2x128xf32>
    %1 = vector.shape_cast %0 : vector<1x2x128xf32> to vector<2x128xf32>
    %2 = vector.shape_cast %1 : vector<2x128xf32> to vector<2x1x128xf32>
    %c0_2 = arith.constant 0 : index
    %c0_3 = arith.constant 0 : index
    %c0_4 = arith.constant 0 : index
    %c0_5 = arith.constant 0 : index
    %3 = vector.load %arg1[%c0_2, %c0_3, %c0_4, %c0_5] : memref<3x2x6x1xf32, #tpu.memory_space<vmem>>, vector<1x2x6x1xf32>
    %4 = vector.shape_cast %3 : vector<1x2x6x1xf32> to vector<2x6x1xf32>
    %5 = vector.broadcast %2 : vector<2x1x128xf32> to vector<2x6x128xf32>
    %6 = vector.broadcast %4 : vector<2x6x1xf32> to vector<2x6x128xf32>
    %7 = arith.subf %5, %6 : vector<2x6x128xf32>
    %c1 = arith.constant 1 : index
    %c0_6 = arith.constant 0 : index
    %c0_7 = arith.constant 0 : index
    %8 = vector.load %arg3[%c1, %c0_6, %c0_7] : memref<3x2x128xf32, #tpu.memory_space<vmem>>, vector<1x2x128xf32>
    %9 = vector.shape_cast %8 : vector<1x2x128xf32> to vector<2x128xf32>
    %10 = vector.shape_cast %9 : vector<2x128xf32> to vector<2x1x128xf32>
    %c1_8 = arith.constant 1 : index
    %c0_9 = arith.constant 0 : index
    %c0_10 = arith.constant 0 : index
    %c0_11 = arith.constant 0 : index
    %11 = vector.load %arg1[%c1_8, %c0_9, %c0_10, %c0_11] : memref<3x2x6x1xf32, #tpu.memory_space<vmem>>, vector<1x2x6x1xf32>
    %12 = vector.shape_cast %11 : vector<1x2x6x1xf32> to vector<2x6x1xf32>
    %13 = vector.broadcast %10 : vector<2x1x128xf32> to vector<2x6x128xf32>
    %14 = vector.broadcast %12 : vector<2x6x1xf32> to vector<2x6x128xf32>
    %15 = arith.subf %13, %14 : vector<2x6x128xf32>
    %c2 = arith.constant 2 : index
    %c0_12 = arith.constant 0 : index
    %c0_13 = arith.constant 0 : index
    %16 = vector.load %arg3[%c2, %c0_12, %c0_13] : memref<3x2x128xf32, #tpu.memory_space<vmem>>, vector<1x2x128xf32>
    %17 = vector.shape_cast %16 : vector<1x2x128xf32> to vector<2x128xf32>
    %18 = vector.shape_cast %17 : vector<2x128xf32> to vector<2x1x128xf32>
    %c2_14 = arith.constant 2 : index
    %c0_15 = arith.constant 0 : index
    %c0_16 = arith.constant 0 : index
    %c0_17 = arith.constant 0 : index
    %19 = vector.load %arg1[%c2_14, %c0_15, %c0_16, %c0_17] : memref<3x2x6x1xf32, #tpu.memory_space<vmem>>, vector<1x2x6x1xf32>
    %20 = vector.shape_cast %19 : vector<1x2x6x1xf32> to vector<2x6x1xf32>
    %21 = vector.broadcast %18 : vector<2x1x128xf32> to vector<2x6x128xf32>
    %22 = vector.broadcast %20 : vector<2x6x1xf32> to vector<2x6x128xf32>
    %23 = arith.subf %21, %22 : vector<2x6x128xf32>
    %24 = arith.mulf %7, %7 : vector<2x6x128xf32>
    %25 = arith.mulf %15, %15 : vector<2x6x128xf32>
    %26 = arith.addf %24, %25 : vector<2x6x128xf32>
    %27 = arith.mulf %23, %23 : vector<2x6x128xf32>
    %28 = arith.addf %26, %27 : vector<2x6x128xf32>
    %cst = arith.constant 9.99999996E-13 : f32
    %29 = vector.broadcast %cst : f32 to vector<2x6x128xf32>
    %30 = arith.addf %28, %29 : vector<2x6x128xf32>
    %31 = math.rsqrt %30 : vector<2x6x128xf32>
    %32 = arith.mulf %28, %31 : vector<2x6x128xf32>
    %33 = arith.mulf %7, %31 : vector<2x6x128xf32>
    %34 = arith.mulf %15, %31 : vector<2x6x128xf32>
    %35 = arith.mulf %23, %31 : vector<2x6x128xf32>
    %36 = arith.mulf %33, %33 : vector<2x6x128xf32>
    %37 = arith.mulf %34, %34 : vector<2x6x128xf32>
    %38 = arith.addf %36, %37 : vector<2x6x128xf32>
    %cst_18 = arith.constant 9.99999996E-13 : f32
    %39 = vector.broadcast %cst_18 : f32 to vector<2x6x128xf32>
    %40 = arith.maximumf %38, %39 : vector<2x6x128xf32>
    %41 = math.rsqrt %40 : vector<2x6x128xf32>
    %42 = arith.mulf %38, %41 : vector<2x6x128xf32>
    %43 = arith.mulf %33, %41 : vector<2x6x128xf32>
    %44 = arith.mulf %34, %41 : vector<2x6x128xf32>
    %c0_19 = arith.constant 0 : index
    %c0_20 = arith.constant 0 : index
    %c0_21 = arith.constant 0 : index
    %c0_22 = arith.constant 0 : index
    %45 = vector.load %arg2[%c0_19, %c0_20, %c0_21, %c0_22] : memref<9x2x6x1xf32, #tpu.memory_space<vmem>>, vector<9x2x6x1xf32>
    %46 = vector.extract_strided_slice %45 {offsets = [0, 0, 0, 0], sizes = [1, 2, 6, 1], strides = [1, 1, 1, 1]} : vector<9x2x6x1xf32> to vector<1x2x6x1xf32>
    %47 = vector.shape_cast %46 : vector<1x2x6x1xf32> to vector<2x6x1xf32>
    %48 = vector.extract_strided_slice %45 {offsets = [1, 0, 0, 0], sizes = [1, 2, 6, 1], strides = [1, 1, 1, 1]} : vector<9x2x6x1xf32> to vector<1x2x6x1xf32>
    %49 = vector.shape_cast %48 : vector<1x2x6x1xf32> to vector<2x6x1xf32>
    %50 = vector.broadcast %49 : vector<2x6x1xf32> to vector<2x6x128xf32>
    %51 = arith.mulf %50, %42 : vector<2x6x128xf32>
    %52 = vector.broadcast %47 : vector<2x6x1xf32> to vector<2x6x128xf32>
    %53 = arith.addf %52, %51 : vector<2x6x128xf32>
    %54 = vector.extract_strided_slice %45 {offsets = [2, 0, 0, 0], sizes = [1, 2, 6, 1], strides = [1, 1, 1, 1]} : vector<9x2x6x1xf32> to vector<1x2x6x1xf32>
    %55 = vector.shape_cast %54 : vector<1x2x6x1xf32> to vector<2x6x1xf32>
    %56 = vector.broadcast %55 : vector<2x6x1xf32> to vector<2x6x128xf32>
    %57 = arith.mulf %56, %35 : vector<2x6x128xf32>
    %58 = arith.addf %53, %57 : vector<2x6x128xf32>
    %59 = vector.extract_strided_slice %45 {offsets = [3, 0, 0, 0], sizes = [1, 2, 6, 1], strides = [1, 1, 1, 1]} : vector<9x2x6x1xf32> to vector<1x2x6x1xf32>
    %60 = vector.shape_cast %59 : vector<1x2x6x1xf32> to vector<2x6x1xf32>
    %61 = vector.broadcast %60 : vector<2x6x1xf32> to vector<2x6x128xf32>
    %62 = arith.mulf %61, %44 : vector<2x6x128xf32>
    %63 = arith.addf %58, %62 : vector<2x6x128xf32>
    %64 = vector.extract_strided_slice %45 {offsets = [4, 0, 0, 0], sizes = [1, 2, 6, 1], strides = [1, 1, 1, 1]} : vector<9x2x6x1xf32> to vector<1x2x6x1xf32>
    %65 = vector.shape_cast %64 : vector<1x2x6x1xf32> to vector<2x6x1xf32>
    %66 = vector.broadcast %65 : vector<2x6x1xf32> to vector<2x6x128xf32>
    %67 = arith.mulf %66, %43 : vector<2x6x128xf32>
    %68 = arith.addf %63, %67 : vector<2x6x128xf32>
    %69 = vector.extract_strided_slice %45 {offsets = [5, 0, 0, 0], sizes = [1, 2, 6, 1], strides = [1, 1, 1, 1]} : vector<9x2x6x1xf32> to vector<1x2x6x1xf32>
    %70 = vector.shape_cast %69 : vector<1x2x6x1xf32> to vector<2x6x1xf32>
    %71 = vector.broadcast %70 : vector<2x6x1xf32> to vector<2x6x128xf32>
    %72 = arith.mulf %71, %33 : vector<2x6x128xf32>
    %73 = arith.addf %68, %72 : vector<2x6x128xf32>
    %74 = vector.extract_strided_slice %45 {offsets = [6, 0, 0, 0], sizes = [1, 2, 6, 1], strides = [1, 1, 1, 1]} : vector<9x2x6x1xf32> to vector<1x2x6x1xf32>
    %75 = vector.shape_cast %74 : vector<1x2x6x1xf32> to vector<2x6x1xf32>
    %76 = vector.broadcast %75 : vector<2x6x1xf32> to vector<2x6x128xf32>
    %77 = arith.mulf %76, %34 : vector<2x6x128xf32>
    %78 = arith.addf %73, %77 : vector<2x6x128xf32>
    %79 = vector.extract_strided_slice %45 {offsets = [7, 0, 0, 0], sizes = [1, 2, 6, 1], strides = [1, 1, 1, 1]} : vector<9x2x6x1xf32> to vector<1x2x6x1xf32>
    %80 = vector.shape_cast %79 : vector<1x2x6x1xf32> to vector<2x6x1xf32>
    %81 = arith.mulf %35, %43 : vector<2x6x128xf32>
    %82 = vector.broadcast %80 : vector<2x6x1xf32> to vector<2x6x128xf32>
    %83 = arith.mulf %82, %81 : vector<2x6x128xf32>
    %84 = arith.addf %78, %83 : vector<2x6x128xf32>
    %85 = vector.extract_strided_slice %45 {offsets = [8, 0, 0, 0], sizes = [1, 2, 6, 1], strides = [1, 1, 1, 1]} : vector<9x2x6x1xf32> to vector<1x2x6x1xf32>
    %86 = vector.shape_cast %85 : vector<1x2x6x1xf32> to vector<2x6x1xf32>
    %87 = arith.mulf %35, %44 : vector<2x6x128xf32>
    %88 = vector.broadcast %86 : vector<2x6x1xf32> to vector<2x6x128xf32>
    %89 = arith.mulf %88, %87 : vector<2x6x128xf32>
    %90 = arith.addf %84, %89 : vector<2x6x128xf32>
    %cst_23 = arith.constant 5.000000e-01 : f32
    %91 = vector.broadcast %cst_23 : f32 to vector<2x6x128xf32>
    %92 = arith.mulf %91, %90 : vector<2x6x128xf32>
    %93 = math.tanh %92 : vector<2x6x128xf32>
    %cst_24 = arith.constant 5.000000e-01 : f32
    %94 = vector.broadcast %cst_24 : f32 to vector<2x6x128xf32>
    %95 = arith.mulf %94, %93 : vector<2x6x128xf32>
    %cst_25 = arith.constant 5.000000e-01 : f32
    %96 = vector.broadcast %cst_25 : f32 to vector<2x6x128xf32>
    %97 = arith.addf %95, %96 : vector<2x6x128xf32>
    %cst_26 = arith.constant 1.000000e-01 : f32
    %98 = vector.broadcast %cst_26 : f32 to vector<2x6x128xf32>
    %99 = arith.mulf %98, %97 : vector<2x6x128xf32>
    %c0_27 = arith.constant 0 : index
    %c0_28 = arith.constant 0 : index
    %c0_29 = arith.constant 0 : index
    %100 = vector.load %arg5[%c0_27, %c0_28, %c0_29] : memref<2x6x128xf32, #tpu.memory_space<vmem>>, vector<2x6x128xf32>
    tpu.vector_store %arg5[%c0_27, %c0_28, %c0_29], %99 {strides = array<i32>} : memref<2x6x128xf32, #tpu.memory_space<vmem>>, vector<2x6x128xf32>,
    %101 = arith.subf %99, %32 : vector<2x6x128xf32>
    %cst_30 = arith.constant 1.000000e+01 : f32
    %102 = vector.broadcast %cst_30 : f32 to vector<2x6x128xf32>
    %103 = arith.mulf %101, %102 : vector<2x6x128xf32>
    %cst_31 = arith.constant 5.000000e-01 : f32
    %104 = vector.broadcast %cst_31 : f32 to vector<2x6x128xf32>
    %105 = arith.mulf %104, %103 : vector<2x6x128xf32>
    %106 = math.tanh %105 : vector<2x6x128xf32>
    %cst_32 = arith.constant 5.000000e-01 : f32
    %107 = vector.broadcast %cst_32 : f32 to vector<2x6x128xf32>
    %108 = arith.mulf %107, %106 : vector<2x6x128xf32>
    %cst_33 = arith.constant 5.000000e-01 : f32
    %109 = vector.broadcast %cst_33 : f32 to vector<2x6x128xf32>
    %110 = arith.addf %108, %109 : vector<2x6x128xf32>
    %c0_34 = arith.constant 0 : index
    %c0_35 = arith.constant 0 : index
    %c0_36 = arith.constant 0 : index
    %111 = vector.load %arg4[%c0_34, %c0_35, %c0_36] : memref<2x6x128xf32, #tpu.memory_space<vmem>>, vector<2x6x128xf32>
    tpu.vector_store %arg4[%c0_34, %c0_35, %c0_36], %110 {strides = array<i32>} : memref<2x6x128xf32, #tpu.memory_space<vmem>>, vector<2x6x128xf32>,
    return
  }
  func.func @transform_0(%arg0: i32) -> (i32, i32, i32, i32) {
    %c0_i32 = arith.constant 0 : i32
    %c0_i32_0 = arith.constant 0 : i32
    %c0_i32_1 = arith.constant 0 : i32
    %c0_i32_2 = arith.constant 0 : i32
    %c0_i32_3 = arith.constant 0 : i32
    return %c0_i32, %c0_i32_0, %c0_i32_1, %c0_i32_2 : i32, i32, i32, i32
  }
  func.func @transform_1(%arg0: i32) -> (i32, i32, i32, i32) {
    %c0_i32 = arith.constant 0 : i32
    %c0_i32_0 = arith.constant 0 : i32
    %c0_i32_1 = arith.constant 0 : i32
    %c0_i32_2 = arith.constant 0 : i32
    %c0_i32_3 = arith.constant 0 : i32
    return %c0_i32, %c0_i32_0, %c0_i32_1, %c0_i32_2 : i32, i32, i32, i32
  }
  func.func @transform_2(%arg0: i32) -> (i32, i32, i32) {
    %c0_i32 = arith.constant 0 : i32
    %c0_i32_0 = arith.constant 0 : i32
    %c0_i32_1 = arith.constant 0 : i32
    return %c0_i32, %c0_i32_0, %arg0 : i32, i32, i32
  }
  func.func @transform_3(%arg0: i32) -> (i32, i32, i32) {
    %c0_i32 = arith.constant 0 : i32
    %c0_i32_0 = arith.constant 0 : i32
    %c0_i32_1 = arith.constant 0 : i32
    return %c0_i32, %c0_i32_0, %arg0 : i32, i32, i32
  }
  func.func @transform_4(%arg0: i32) -> (i32, i32, i32) {
    %c0_i32 = arith.constant 0 : i32
    %c0_i32_0 = arith.constant 0 : i32
    %c0_i32_1 = arith.constant 0 : i32
    return %c0_i32, %c0_i32_0, %arg0 : i32, i32, i32
  }
}

</mosaic_0001>

<llo_original>
// kernel: tpu_custom_call.1
$region0: #{tpu_custom_call.1}
  #allocation0 [shape = 'u32[]', space=smem, size = 0x4, offset = 0x4, fixed_abs, tag = 'smem constant byte address 0x4 - core index']
  #allocation1 [shape = 'u32[144,128]{1,0:T(1,128)}', space=vmem, size = 0x12000, scoped, tag = 'internal scratch']
  %s0 = inlined_call_operand.vmem [shape: f32[3,2,6,1], index: 0, kind: input, shape index: {}]
  %s1 = inlined_call_operand.vmem [shape: f32[9,2,6,1], index: 1, kind: input, shape index: {}]
  %s2 = inlined_call_operand.vmem [shape: f32[3,2,128], index: 2, kind: input, shape index: {}]
  %s3 = inlined_call_operand.vmem [shape: f32[2,6,128], index: 3, kind: output, shape index: {0}]
  %s4 = inlined_call_operand.vmem [shape: f32[2,6,128], index: 4, kind: output, shape index: {1}]
  %5 = xla_tuple %s3, %s4
  %s6 = sld [smem:[#allocation0]]
  $region30: #{tpu_custom_call.1} parent=0
    _
  %s8 = ssub.s32 1, %s6
  %s9 = scalar_select 0, %s8, %s6
  // Predicated region
  $region2: #{tpu_custom_call.1} parent=0 // pred_check
    _
  $region3: #{tpu_custom_call.1} parent=0 // pred_check_branch
    %11 = sbr.rel (0) target = $region5
  $region4: #{tpu_custom_call.1} parent=0 // pred_region
    _
  $region5: #{tpu_custom_call.1} parent=0 // pred_fallthru
    _
  // Predicated region
  $region6: #{tpu_custom_call.1} parent=0 // pred_check
    _
  $region7: #{tpu_custom_call.1} parent=0 // pred_check_branch
    %13 = sbr.rel (0) target = $region9
  $region8: #{tpu_custom_call.1} parent=0 // pred_region
    _
  $region9: #{tpu_custom_call.1} parent=0 // pred_fallthru
    _
  // Predicated region
  $region10: #{tpu_custom_call.1} parent=0 // pred_check
    _
  $region11: #{tpu_custom_call.1} parent=0 // pred_check_branch
    %15 = sbr.rel (0) target = $region13
  $region12: #{tpu_custom_call.1} parent=0 // pred_region
    _
  $region13: #{tpu_custom_call.1} parent=0 // pred_fallthru
    _
  %v16 = vld [vmem:[%s2] sm:$0x3]
  %v19 = vunpack.c.l.s4 1966171168
  %v20 = vunpack.c.0.s8 %v19
  %v21 = vlaneseq
  %v22 = vshrl.u32 %v21, 7
  %v23 = vsub.s32 %v20, %v22
  %v24 = vrot.slane %v16, %v23
  %v25 = vcombine.high %v24, %v24
  %v27 = vunpack.c.l.s4 1966171168
  %v28 = vunpack.c.0.s8 %v27
  %v29 = vlaneseq
  %v30 = vshrl.u32 %v29, 7
  %v31 = vsub.s32 %v28, %v30
  %v32 = vrot.slane %v24, %v31
  %v34 = vunpack.c.l.s4 1966171168
  %v35 = vunpack.c.0.s8 %v34
  %v36 = vlaneseq
  %v37 = vshrl.u32 %v36, 7
  %v38 = vsub.s32 %v35, %v37
  %v39 = vrot.slane %v25, %v38
  %v40 = vld [vmem:[%s0] sm:$0x3f]
  %v41 = vld [vmem:[%s0 + $0x8] sm:$0x3f]
  %v42 = vlaneseq
  %v43 = vshrl.u32 %v42, 7
  %v44 = vsub.s32 0, %v43
  %v45 = vrot.slane %v32, %v44
  %v46 = vlaneseq
  %v47 = vshrl.u32 %v46, 7
  %v48 = vsub.s32 0, %v47
  %v49 = vrot.slane %v39, %v48
  %53 = vset.pattern.permute.xlu0 0
  %54 = vperm.xlu0 %53, %v40
  %v55 = vpop.permute.xlu0 %54
  %58 = vset.pattern.permute.xlu0 0
  %59 = vperm.xlu0 %58, %v41
  %v60 = vpop.permute.xlu0 %59
  %v62 = vsub.f32 %v45, %v55
  %v63 = vsub.f32 %v49, %v60
  %s64 = scalar_lea.vmem %s2, 2
  %v65 = vld [vmem:[%s64] sm:$0x3]
  %v68 = vunpack.c.l.s4 1966171168
  %v69 = vunpack.c.0.s8 %v68
  %v70 = vlaneseq
  %v71 = vshrl.u32 %v70, 7
  %v72 = vsub.s32 %v69, %v71
  %v73 = vrot.slane %v65, %v72
  %v74 = vcombine.high %v73, %v73
  %v76 = vunpack.c.l.s4 1966171168
  %v77 = vunpack.c.0.s8 %v76
  %v78 = vlaneseq
  %v79 = vshrl.u32 %v78, 7
  %v80 = vsub.s32 %v77, %v79
  %v81 = vrot.slane %v73, %v80
  %v83 = vunpack.c.l.s4 1966171168
  %v84 = vunpack.c.0.s8 %v83
  %v85 = vlaneseq
  %v86 = vshrl.u32 %v85, 7
  %v87 = vsub.s32 %v84, %v86
  %v88 = vrot.slane %v74, %v87
  %s89 = scalar_lea.vmem %s0, 16
  %v90 = vld [vmem:[%s89] sm:$0x3f]
  %v91 = vld [vmem:[%s89 + $0x8] sm:$0x3f]
  %v92 = vlaneseq
  %v93 = vshrl.u32 %v92, 7
  %v94 = vsub.s32 0, %v93
  %v95 = vrot.slane %v81, %v94
  %v96 = vlaneseq
  %v97 = vshrl.u32 %v96, 7
  %v98 = vsub.s32 0, %v97
  %v99 = vrot.slane %v88, %v98
  %103 = vset.pattern.permute.xlu0 0
  %104 = vperm.xlu0 %103, %v90
  %v105 = vpop.permute.xlu0 %104
  %108 = vset.pattern.permute.xlu0 0
  %109 = vperm.xlu0 %108, %v91
  %v110 = vpop.permute.xlu0 %109
  %v112 = vsub.f32 %v95, %v105
  %v113 = vsub.f32 %v99, %v110
  %s114 = scalar_lea.vmem %s2, 4
  %v115 = vld [vmem:[%s114] sm:$0x3]
  %v118 = vunpack.c.l.s4 1966171168
  %v119 = vunpack.c.0.s8 %v118
  %v120 = vlaneseq
  %v121 = vshrl.u32 %v120, 7
  %v122 = vsub.s32 %v119, %v121
  %v123 = vrot.slane %v115, %v122
  %v124 = vcombine.high %v123, %v123
  %v126 = vunpack.c.l.s4 1966171168
  %v127 = vunpack.c.0.s8 %v126
  %v128 = vlaneseq
  %v129 = vshrl.u32 %v128, 7
  %v130 = vsub.s32 %v127, %v129
  %v131 = vrot.slane %v123, %v130
  %v133 = vunpack.c.l.s4 1966171168
  %v134 = vunpack.c.0.s8 %v133
  %v135 = vlaneseq
  %v136 = vshrl.u32 %v135, 7
  %v137 = vsub.s32 %v134, %v136
  %v138 = vrot.slane %v124, %v137
  %s139 = scalar_lea.vmem %s0, 32
  %v140 = vld [vmem:[%s139] sm:$0x3f]
  %v141 = vld [vmem:[%s139 + $0x8] sm:$0x3f]
  %v142 = vlaneseq
  %v143 = vshrl.u32 %v142, 7
  %v144 = vsub.s32 0, %v143
  %v145 = vrot.slane %v131, %v144
  %v146 = vlaneseq
  %v147 = vshrl.u32 %v146, 7
  %v148 = vsub.s32 0, %v147
  %v149 = vrot.slane %v138, %v148
  %153 = vset.pattern.permute.xlu0 0
  %154 = vperm.xlu0 %153, %v140
  %v155 = vpop.permute.xlu0 %154
  %158 = vset.pattern.permute.xlu0 0
  %159 = vperm.xlu0 %158, %v141
  %v160 = vpop.permute.xlu0 %159
  %v162 = vsub.f32 %v145, %v155
  %v163 = vsub.f32 %v149, %v160
  %v164 = vmul.f32 %v62, %v62
  %v165 = vmul.f32 %v63, %v63
  %v166 = vmul.f32 %v112, %v112
  %v167 = vmul.f32 %v113, %v113
  %v168 = vadd.f32 %v164, %v166
  %v169 = vadd.f32 %v165, %v167
  %v170 = vmul.f32 %v162, %v162
  %v171 = vmul.f32 %v163, %v163
  %v172 = vadd.f32 %v168, %v170
  %v173 = vadd.f32 %v169, %v171
  %v174 = vadd.f32 %v172, 1e-12
  %v175 = vadd.f32 %v173, 1e-12
  %v176 = vrsqrt.pop %v174
  %v177 = vrsqrt.pop %v175
  %v178 = vmul.f32 %v172, %v176
  %v179 = vmul.f32 %v173, %v177
  %v180 = vmul.f32 %v62, %v176
  %v181 = vmul.f32 %v63, %v177
  %v182 = vmul.f32 %v112, %v176
  %v183 = vmul.f32 %v113, %v177
  %v184 = vmul.f32 %v162, %v176
  %v185 = vmul.f32 %v163, %v177
  %v186 = vmul.f32 %v180, %v180
  %v187 = vmul.f32 %v181, %v181
  %v188 = vmul.f32 %v182, %v182
  %v189 = vmul.f32 %v183, %v183
  %v190 = vadd.f32 %v186, %v188
  %v191 = vadd.f32 %v187, %v189
  %v192 = vmax.f32 %v190, 1e-12
  %v193 = vmax.f32 %v191, 1e-12
  %v194 = vrsqrt.pop %v192
  %v195 = vrsqrt.pop %v193
  %v196 = vmul.f32 %v190, %v194
  %v197 = vmul.f32 %v191, %v195
  %v198 = vmul.f32 %v180, %v194
  %v199 = vmul.f32 %v181, %v195
  %v200 = vmul.f32 %v182, %v194
  %v201 = vmul.f32 %v183, %v195
  %v202 = vld [vmem:[%s1] sm:$0x3f]
  %v203 = vld [vmem:[%s1 + $0x8] sm:$0x3f]
  %v204 = vld [vmem:[%s1 + $0x10] sm:$0x3f]
  %v205 = vld [vmem:[%s1 + $0x18] sm:$0x3f]
  %v206 = vld [vmem:[%s1 + $0x20] sm:$0x3f]
  %v207 = vld [vmem:[%s1 + $0x28] sm:$0x3f]
  %v208 = vld [vmem:[%s1 + $0x30] sm:$0x3f]
  %v209 = vld [vmem:[%s1 + $0x38] sm:$0x3f]
  %v210 = vld [vmem:[%s1 + $0x40] sm:$0x3f]
  %v211 = vld [vmem:[%s1 + $0x48] sm:$0x3f]
  %v212 = vld [vmem:[%s1 + $0x50] sm:$0x3f]
  %v213 = vld [vmem:[%s1 + $0x58] sm:$0x3f]
  %v214 = vld [vmem:[%s1 + $0x60] sm:$0x3f]
  %v215 = vld [vmem:[%s1 + $0x68] sm:$0x3f]
  %v216 = vld [vmem:[%s1 + $0x70] sm:$0x3f]
  %v217 = vld [vmem:[%s1 + $0x78] sm:$0x3f]
  %v218 = vld [vmem:[%s1 + $0x80] sm:$0x3f]
  %v219 = vld [vmem:[%s1 + $0x88] sm:$0x3f]
  %221 = vset.pattern.permute.xlu0 0
  %222 = vperm.xlu0 %221, %v204
  %v223 = vpop.permute.xlu0 %222
  %226 = vset.pattern.permute.xlu0 0
  %227 = vperm.xlu0 %226, %v205
  %v228 = vpop.permute.xlu0 %227
  %v230 = vmul.f32 %v223, %v196
  %v231 = vmul.f32 %v228, %v197
  %233 = vset.pattern.permute.xlu0 0
  %234 = vperm.xlu0 %233, %v202
  %v235 = vpop.permute.xlu0 %234
  %238 = vset.pattern.permute.xlu0 0
  %239 = vperm.xlu0 %238, %v203
  %v240 = vpop.permute.xlu0 %239
  %v242 = vadd.f32 %v235, %v230
  %v243 = vadd.f32 %v240, %v231
  %245 = vset.pattern.permute.xlu0 0
  %246 = vperm.xlu0 %245, %v206
  %v247 = vpop.permute.xlu0 %246
  %250 = vset.pattern.permute.xlu0 0
  %251 = vperm.xlu0 %250, %v207
  %v252 = vpop.permute.xlu0 %251
  %v254 = vmul.f32 %v247, %v184
  %v255 = vmul.f32 %v252, %v185
  %v256 = vadd.f32 %v242, %v254
  %v257 = vadd.f32 %v243, %v255
  %259 = vset.pattern.permute.xlu0 0
  %260 = vperm.xlu0 %259, %v208
  %v261 = vpop.permute.xlu0 %260
  %264 = vset.pattern.permute.xlu0 0
  %265 = vperm.xlu0 %264, %v209
  %v266 = vpop.permute.xlu0 %265
  %v268 = vmul.f32 %v261, %v200
  %v269 = vmul.f32 %v266, %v201
  %v270 = vadd.f32 %v256, %v268
  %v271 = vadd.f32 %v257, %v269
  %273 = vset.pattern.permute.xlu0 0
  %274 = vperm.xlu0 %273, %v210
  %v275 = vpop.permute.xlu0 %274
  %278 = vset.pattern.permute.xlu0 0
  %279 = vperm.xlu0 %278, %v211
  %v280 = vpop.permute.xlu0 %279
  %v282 = vmul.f32 %v275, %v198
  %v283 = vmul.f32 %v280, %v199
  %v284 = vadd.f32 %v270, %v282
  %v285 = vadd.f32 %v271, %v283
  %287 = vset.pattern.permute.xlu0 0
  %288 = vperm.xlu0 %287, %v212
  %v289 = vpop.permute.xlu0 %288
  %292 = vset.pattern.permute.xlu0 0
  %293 = vperm.xlu0 %292, %v213
  %v294 = vpop.permute.xlu0 %293
  %v296 = vmul.f32 %v289, %v180
  %v297 = vmul.f32 %v294, %v181
  %v298 = vadd.f32 %v284, %v296
  %v299 = vadd.f32 %v285, %v297
  %301 = vset.pattern.permute.xlu0 0
  %302 = vperm.xlu0 %301, %v214
  %v303 = vpop.permute.xlu0 %302
  %306 = vset.pattern.permute.xlu0 0
  %307 = vperm.xlu0 %306, %v215
  %v308 = vpop.permute.xlu0 %307
  %v310 = vmul.f32 %v303, %v182
  %v311 = vmul.f32 %v308, %v183
  %v312 = vadd.f32 %v298, %v310
  %v313 = vadd.f32 %v299, %v311
  %v314 = vmul.f32 %v184, %v198
  %v315 = vmul.f32 %v185, %v199
  %317 = vset.pattern.permute.xlu0 0
  %318 = vperm.xlu0 %317, %v216
  %v319 = vpop.permute.xlu0 %318
  %322 = vset.pattern.permute.xlu0 0
  %323 = vperm.xlu0 %322, %v217
  %v324 = vpop.permute.xlu0 %323
  %v326 = vmul.f32 %v319, %v314
  %v327 = vmul.f32 %v324, %v315
  %v328 = vadd.f32 %v312, %v326
  %v329 = vadd.f32 %v313, %v327
  %v330 = vmul.f32 %v184, %v200
  %v331 = vmul.f32 %v185, %v201
  %333 = vset.pattern.permute.xlu0 0
  %334 = vperm.xlu0 %333, %v218
  %v335 = vpop.permute.xlu0 %334
  %338 = vset.pattern.permute.xlu0 0
  %339 = vperm.xlu0 %338, %v219
  %v340 = vpop.permute.xlu0 %339
  %v342 = vmul.f32 %v335, %v330
  %v343 = vmul.f32 %v340, %v331
  %v344 = vadd.f32 %v328, %v342
  %v345 = vadd.f32 %v329, %v343
  %v346 = vmul.f32 %v344, 0.5
  %v347 = vmul.f32 %v345, 0.5
  %v348 = vtanh.pop %v346
  %v349 = vtanh.pop %v347
  %v350 = vmul.f32 %v348, 0.5
  %v351 = vmul.f32 %v349, 0.5
  %v352 = vadd.f32 %v350, 0.5
  %v353 = vadd.f32 %v351, 0.5
  %v354 = vmul.f32 %v352, 0.1
  %v355 = vmul.f32 %v353, 0.1
  %356 = vst [vmem:[%s4] sm:$0x3f] %v354
  %357 = vst [vmem:[%s4 + $0x8] sm:$0x3f] %v355
  %v358 = vsub.f32 %v354, %v178
  %v359 = vsub.f32 %v355, %v179
  %v360 = vmul.f32 %v358, 10.0
  %v361 = vmul.f32 %v359, 10.0
  %v362 = vmul.f32 %v360, 0.5
  %v363 = vmul.f32 %v361, 0.5
  %v364 = vtanh.pop %v362
  %v365 = vtanh.pop %v363
  %v366 = vmul.f32 %v364, 0.5
  %v367 = vmul.f32 %v365, 0.5
  %v368 = vadd.f32 %v366, 0.5
  %v369 = vadd.f32 %v367, 0.5
  %370 = vst [vmem:[%s3] sm:$0x3f] %v368
  %371 = vst [vmem:[%s3 + $0x8] sm:$0x3f] %v369
  // Predicated region
  $region14: #{tpu_custom_call.1} parent=0 // pred_check
    _
  $region15: #{tpu_custom_call.1} parent=0 // pred_check_branch
    %373 = sbr.rel (0) target = $region17
  $region16: #{tpu_custom_call.1} parent=0 // pred_region
    _
  $region17: #{tpu_custom_call.1} parent=0 // pred_fallthru
    _
  // Predicated region
  $region18: #{tpu_custom_call.1} parent=0 // pred_check
    _
  $region19: #{tpu_custom_call.1} parent=0 // pred_check_branch
    %375 = sbr.rel (0) target = $region21
  $region20: #{tpu_custom_call.1} parent=0 // pred_region
    _
  $region21: #{tpu_custom_call.1} parent=0 // pred_fallthru
    _
  // Predicated region
  $region22: #{tpu_custom_call.1} parent=0 // pred_check
    _
  $region23: #{tpu_custom_call.1} parent=0 // pred_check_branch
    %377 = sbr.rel (0) target = $region25
  $region24: #{tpu_custom_call.1} parent=0 // pred_region
    _
  $region25: #{tpu_custom_call.1} parent=0 // pred_fallthru
    _
  // Predicated region
  $region26: #{tpu_custom_call.1} parent=0 // pred_check
    _
  $region27: #{tpu_custom_call.1} parent=0 // pred_check_branch
    %379 = sbr.rel (0) target = $region29
  $region28: #{tpu_custom_call.1} parent=0 // pred_region
    _
  $region29: #{tpu_custom_call.1} parent=0 // pred_fallthru
    _

</llo_original>
